<compile_context>
chip_gen: v7x
topology: tpu7x:2x2x1
jax: 0.10.0
libtpu: 0.0.40
codegen_flags: <defaults>
</compile_context>

<pallas_src>
import functools

import jax
import jax.numpy as jnp
from jax.experimental import pallas as pl
from jax.experimental.pallas import tpu as pltpu


def _round_up(v: int, m: int) -> int:
    return ((v + m - 1) // m) * m


# ------------------------- fused forward-pass kernel -------------------------
def _make_fused_kernel(heads: int, fh: int, in_dim: int, negative_slope: float = 0.2):
    """conv1(GAT)+ELU -> conv2(GAT)+ELU -> mean-pool -> fc, single kernel body.

    Packed-parameter layout (single (rows, F) f32 operand, F = heads*fh):
      rows [0, in_dim)           : w1                        (in_dim, F)
      rows [off_w2, off_w2 + F)  : w2                        (F, F)
      rows [off_wf, off_wf + F)  : wf, lane-padded           (F, F)  cols [0, embed)
      rows [off_a,  off_a  + F)  : block-diag attention mat  (F, F)  cols [0, 4*heads)
                                   cols 0:H    = a1_src, H:2H  = a1_dst,
                                   cols 2H:3H  = a2_src, 3H:4H = a2_dst
      rows [off_b,  off_b  + 8)  : row 0 = b1, row 1 = b2, row 2 = bf (lane-padded)
    All section starts are multiples of 8, so every in-kernel slice is tile-aligned.
    """
    F = heads * fh
    off_w2 = _round_up(in_dim, 8)
    off_wf = off_w2 + F
    off_a = off_wf + F
    off_b = off_a + F

    def elu(v):
        # exp on the clamped value so the unselected branch cannot overflow.
        return jnp.where(v > 0, v, jnp.exp(jnp.minimum(v, 0.0)) - 1.0)

    def kernel(x_ref, adj_ref, p_ref, out_ref):
        adj_ok = adj_ref[...] > 0.0            # (N, N); adj[i, j] = 1 iff edge j -> i

        attn_mat = p_ref[off_a:off_a + F, :]   # (F, F)  8-row-aligned slice
        bias_blk = p_ref[off_b:off_b + 8, :]   # one aligned (8, F) load, rows 0/1/2 used

        def gat_layer(feat, w, src_c0, dst_c0, bias, approx):
            """One GATConv (heads concatenated) + bias + ELU; result stays in vregs."""
            xw = jnp.dot(feat, w, preferred_element_type=jnp.float32)       # (N, F)
            # all per-head src/dst attention coefficients with one MXU dot
            al = jnp.dot(xw, attn_mat, preferred_element_type=jnp.float32)  # (N, F)
            src_t = al[:, src_c0:src_c0 + heads].T                          # (H, N)
            outs = []
            for h in range(heads):                                          # static unroll
                xh = xw[:, h * fh:(h + 1) * fh]                             # (N, fh)
                # scores[i, j] = alpha_dst[i] + alpha_src[j]   (i=target, j=source)
                s = al[:, dst_c0 + h:dst_c0 + h + 1] + src_t[h:h + 1, :]    # (N, N)
                s = jnp.where(s > 0, s, negative_slope * s)                 # LeakyReLU(0.2)
                s = jnp.where(adj_ok, s, -1e30)                             # mask non-edges
                m = jnp.max(s, axis=-1, keepdims=True)
                e = jnp.exp(s - m)
                denom = jnp.sum(e, axis=-1, keepdims=True)
                attn = e * pl.reciprocal(denom, approx=approx)
                outs.append(jnp.dot(attn, xh, preferred_element_type=jnp.float32))
            # one lane concat (XLU slot has slack); no VMEM round-trip for layer output
            return elu(jnp.concatenate(outs, axis=-1) + bias)               # (N, F)

        # layer 1 uses the approx EUP reciprocal; layer 2 is exact so the softmax
        # approximation error does not compound into the pooled embedding.
        x1 = gat_layer(x_ref[...], p_ref[0:in_dim, :],
                       0, heads, bias_blk[0:1, :], approx=True)
        x2 = gat_layer(x1, p_ref[off_w2:off_w2 + F, :],
                       2 * heads, 3 * heads, bias_blk[1:2, :], approx=False)

        # global_mean_pool (single graph): cross-sublane mean (XLU), not an M=1 matmul
        pooled = jnp.mean(x2, axis=0, keepdims=True)                        # (1, F)
        # single fc matmul; wf/bf are lane-padded so this store is lane-dense (1, 128)
        out_ref[...] = (jnp.dot(pooled, p_ref[off_wf:off_wf + F, :],
                                preferred_element_type=jnp.float32)
                        + bias_blk[2:3, :])

    return kernel


@functools.partial(jax.jit, static_argnames=("heads", "fh", "in_dim", "embed"))
def zslgnn_forward(x, adj, packed_params, *, heads, fh, in_dim, embed):
    F = heads * fh
    kernel = _make_fused_kernel(heads=heads, fh=fh, in_dim=in_dim)
    vmem = lambda: pl.BlockSpec(memory_space=pltpu.MemorySpace.VMEM)
    out = pl.pallas_call(
        kernel,
        out_shape=jax.ShapeDtypeStruct((1, F), jnp.float32),
        in_specs=[vmem(), vmem(), vmem()],           # x, adj, packed params -> 3 DMAs
        out_specs=vmem(),
    )(x, adj, packed_params)
    return out[:, :embed]                            # drop lane padding (wf/bf zeros)


# ----------------------- host-side parameter packing -----------------------
def _pack_params(w1, a1_src, a1_dst, b1, w2, a2_src, a2_dst, b2, wf, bf):
    """Pack all weights/biases into one contiguous (rows, F) f32 buffer (one DMA)."""
    in_dim = w1.shape[0]
    heads, fh = a1_src.shape
    F = heads * fh
    embed = wf.shape[1]
    assert w1.shape == (in_dim, F) and w2.shape == (F, F) and wf.shape == (F, embed)
    assert 4 * heads <= F and embed <= F

    off_w2 = _round_up(in_dim, 8)
    off_wf = off_w2 + F
    off_a = off_wf + F
    off_b = off_a + F
    total = off_b + 8

    P = jnp.zeros((total, F), jnp.float32)
    P = P.at[0:in_dim, :].set(w1)
    P = P.at[off_w2:off_w2 + F, :].set(w2)
    P = P.at[off_wf:off_wf + F, :embed].set(wf)
    # block-diagonal attention matrix: one MXU dot yields every head's src/dst coeff,
    # replacing 2*heads cross-lane (XLU) reductions inside the kernel.
    A = jnp.zeros((F, F), jnp.float32)
    for h in range(heads):
        rows = slice(h * fh, (h + 1) * fh)
        A = A.at[rows, h].set(a1_src[h])
        A = A.at[rows, heads + h].set(a1_dst[h])
        A = A.at[rows, 2 * heads + h].set(a2_src[h])
        A = A.at[rows, 3 * heads + h].set(a2_dst[h])
    P = P.at[off_a:off_a + F, :].set(A)
    P = P.at[off_b + 0, :].set(b1.reshape(-1))
    P = P.at[off_b + 1, :].set(b2.reshape(-1))
    P = P.at[off_b + 2, :embed].set(bf.reshape(-1))
    return P


class ZSLGNNPallas:
    """GATConv(in->hid, heads=2, concat) + ELU -> GATConv(2*hid->hid, heads=2) + ELU
    -> global_mean_pool (single graph) -> Linear(2*hid -> embed).  Eval mode."""

    def __init__(self, key, input_dim=4, hidden_dim=64, embed_dim=64, heads=2):
        self.heads = heads
        self.hidden_dim = hidden_dim
        self.input_dim = input_dim
        self.embed_dim = embed_dim
        k = jax.random.split(key, 8)
        s = 0.1
        # conv1: GATConv(input_dim -> hidden_dim, heads=2, concat=True)
        self.w1 = (jax.random.normal(k[0], (input_dim, heads * hidden_dim)) * s).astype(jnp.float32)
        self.a1_src = (jax.random.normal(k[1], (heads, hidden_dim)) * s).astype(jnp.float32)
        self.a1_dst = (jax.random.normal(k[2], (heads, hidden_dim)) * s).astype(jnp.float32)
        self.b1 = jnp.zeros((1, heads * hidden_dim), jnp.float32)
        # conv2: GATConv(hidden_dim*2 -> hidden_dim, heads=2, concat=True)
        self.w2 = (jax.random.normal(k[3], (heads * hidden_dim, heads * hidden_dim)) * s).astype(jnp.float32)
        self.a2_src = (jax.random.normal(k[4], (heads, hidden_dim)) * s).astype(jnp.float32)
        self.a2_dst = (jax.random.normal(k[5], (heads, hidden_dim)) * s).astype(jnp.float32)
        self.b2 = jnp.zeros((1, heads * hidden_dim), jnp.float32)
        # fc: Linear(hidden_dim*2 -> embed_dim)
        self.wf = (jax.random.normal(k[6], (heads * hidden_dim, embed_dim)) * s).astype(jnp.float32)
        self.bf = (jax.random.normal(k[7], (1, embed_dim)) * s).astype(jnp.float32)
        # single packed parameter buffer (host, once)
        self.params = _pack_params(self.w1, self.a1_src, self.a1_dst, self.b1,
                                   self.w2, self.a2_src, self.a2_dst, self.b2,
                                   self.wf, self.bf)

    def __call__(self, x, adj):
        # single-graph global_mean_pool (batch == zeros); dropout = identity (eval)
        return zslgnn_forward(x, adj, self.params, heads=self.heads,
                              fh=self.hidden_dim, in_dim=self.input_dim,
                              embed=self.embed_dim)


# ------------------------------ reference (jnp) -------------------------------
def _ref_gat(x, adj, w, a_src, a_dst, b, heads, fout):
    xw = x @ w
    outs = []
    for hh in range(heads):
        xh = xw[:, hh * fout:(hh + 1) * fout]
        al_s = (xh * a_src[hh]).sum(-1)
        al_d = (xh * a_dst[hh]).sum(-1)
        s = al_d[:, None] + al_s[None, :]
        s = jnp.where(s > 0, s, 0.2 * s)
        s = jnp.where(adj > 0, s, -1e30)
        attn = jax.nn.softmax(s, axis=-1)
        outs.append(attn @ xh)
    out = jnp.concatenate(outs, -1) + b
    return jnp.where(out > 0, out, jnp.exp(jnp.minimum(out, 0.0)) - 1.0)


def _ref_forward(model, x, adj):
    h = model.hidden_dim
    x1 = _ref_gat(x, adj, model.w1, model.a1_src, model.a1_dst, model.b1, model.heads, h)
    x2 = _ref_gat(x1, adj, model.w2, model.a2_src, model.a2_dst, model.b2, model.heads, h)
    return jnp.mean(x2, axis=0, keepdims=True) @ model.wf + model.bf


# ---------------------------------- main --------------------------------------
if __name__ == "__main__":
    key = jax.random.PRNGKey(0)
    kx, kp = jax.random.split(key)

    N, INPUT_DIM, HIDDEN, EMBED, HEADS = 8, 4, 64, 64, 2

    # node features
    x = jax.random.normal(kx, (N, INPUT_DIM), dtype=jnp.float32)

    # deterministic ring graph, edge_index shape (2, E): row0 = src, row1 = dst
    src = jnp.concatenate([jnp.arange(N), (jnp.arange(N) + 1) % N])
    dst = jnp.concatenate([(jnp.arange(N) + 1) % N, jnp.arange(N)])
    edge_index = jnp.stack([src, dst], axis=0)                     # (2, 16)

    # dense adjacency: adj[target, source] = 1, plus self-loops (GATConv default)
    adj = jnp.zeros((N, N), jnp.float32).at[edge_index[1], edge_index[0]].set(1.0)
    adj = adj.at[jnp.arange(N), jnp.arange(N)].set(1.0)

    # precondition for the masked softmax: every target row has >= 1 incoming edge
    assert float(jnp.min(jnp.sum(adj, axis=1))) > 0.0, "adjacency has an empty row"

    model = ZSLGNNPallas(kp, input_dim=INPUT_DIM, hidden_dim=HIDDEN,
                         embed_dim=EMBED, heads=HEADS)

    out = jax.block_until_ready(model(x, adj))
    ref = _ref_forward(model, x, adj)

    assert out.shape == (1, EMBED), out.shape
    # tolerance covers pl.reciprocal(approx=True) in the layer-1 softmax only
    # (layer 2 uses the exact reciprocal, per review's correctness note).
    assert jnp.allclose(out, ref, rtol=1e-2, atol=1e-3), "mismatch vs. reference"

    print("KERNEL_OK")
</pallas_src>

<mosaic_0001>
module attributes {stable_mosaic.version = 11 : i64} {
  func.func @kernel(%arg0: memref<8x4xf32, #tpu.memory_space<vmem>>, %arg1: memref<8x8xf32, #tpu.memory_space<vmem>>, %arg2: memref<400x128xf32, #tpu.memory_space<vmem>>, %arg3: memref<1x128xf32, #tpu.memory_space<vmem>>) attributes {dimension_semantics = [], scalar_prefetch = 0 : i64, scratch_operands = 0 : i64, tpu.core_type = #tpu.core_type<tc>} {
    %c0 = arith.constant 0 : index
    %c0_0 = arith.constant 0 : index
    %0 = vector.load %arg1[%c0, %c0_0] : memref<8x8xf32, #tpu.memory_space<vmem>>, vector<8x8xf32>
    %cst = arith.constant 0.000000e+00 : f32
    %1 = vector.broadcast %cst : f32 to vector<8x8xf32>
    %2 = arith.cmpf ogt, %0, %1 : vector<8x8xf32>
    %c264 = arith.constant 264 : index
    %c0_1 = arith.constant 0 : index
    %3 = vector.load %arg2[%c264, %c0_1] : memref<400x128xf32, #tpu.memory_space<vmem>>, vector<128x128xf32>
    %c392 = arith.constant 392 : index
    %c0_2 = arith.constant 0 : index
    %4 = vector.load %arg2[%c392, %c0_2] : memref<400x128xf32, #tpu.memory_space<vmem>>, vector<8x128xf32>
    %c0_3 = arith.constant 0 : index
    %c0_4 = arith.constant 0 : index
    %5 = vector.load %arg0[%c0_3, %c0_4] : memref<8x4xf32, #tpu.memory_space<vmem>>, vector<8x4xf32>
    %c0_5 = arith.constant 0 : index
    %c0_6 = arith.constant 0 : index
    %6 = vector.load %arg2[%c0_5, %c0_6] : memref<400x128xf32, #tpu.memory_space<vmem>>, vector<4x128xf32>
    %7 = vector.extract_strided_slice %4 {offsets = [0, 0], sizes = [1, 128], strides = [1, 1]} : vector<8x128xf32> to vector<1x128xf32>
    %cst_7 = arith.constant dense<0.000000e+00> : vector<8x128xf32>
    %8 = tpu.matmul %5, %6, %cst_7 {dimension_numbers = #tpu.dot_dimension_numbers<[1], [0], [0], [1], [0, 0, 1, 1], [], []>} : vector<8x4xf32>, vector<4x128xf32>, vector<8x128xf32> -> vector<8x128xf32>
    %cst_8 = arith.constant dense<0.000000e+00> : vector<8x128xf32>
    %9 = tpu.matmul %8, %3, %cst_8 {dimension_numbers = #tpu.dot_dimension_numbers<[1], [0], [0], [1], [0, 0, 1, 1], [], []>} : vector<8x128xf32>, vector<128x128xf32>, vector<8x128xf32> -> vector<8x128xf32>
    %10 = vector.extract_strided_slice %9 {offsets = [0, 0], sizes = [8, 2], strides = [1, 1]} : vector<8x128xf32> to vector<8x2xf32>
    %11 = tpu.transpose %10, [1, 0] : vector<8x2xf32> -> vector<2x8xf32>
    %12 = vector.extract_strided_slice %8 {offsets = [0, 0], sizes = [8, 64], strides = [1, 1]} : vector<8x128xf32> to vector<8x64xf32>
    %13 = vector.extract_strided_slice %9 {offsets = [0, 2], sizes = [8, 1], strides = [1, 1]} : vector<8x128xf32> to vector<8x1xf32>
    %14 = vector.extract_strided_slice %11 {offsets = [0, 0], sizes = [1, 8], strides = [1, 1]} : vector<2x8xf32> to vector<1x8xf32>
    %15 = vector.broadcast %13 : vector<8x1xf32> to vector<8x8xf32>
    %16 = vector.broadcast %14 : vector<1x8xf32> to vector<8x8xf32>
    %17 = arith.addf %15, %16 : vector<8x8xf32>
    %cst_9 = arith.constant 0.000000e+00 : f32
    %18 = vector.broadcast %cst_9 : f32 to vector<8x8xf32>
    %19 = arith.cmpf ogt, %17, %18 : vector<8x8xf32>
    %cst_10 = arith.constant 2.000000e-01 : f32
    %20 = vector.broadcast %cst_10 : f32 to vector<8x8xf32>
    %21 = arith.mulf %20, %17 : vector<8x8xf32>
    %22 = arith.select %19, %17, %21 : vector<8x8xi1>, vector<8x8xf32>
    %cst_11 = arith.constant -1.000000e+30 : f32
    %23 = vector.broadcast %cst_11 : f32 to vector<8x8xf32>
    %24 = arith.select %2, %22, %23 : vector<8x8xi1>, vector<8x8xf32>
    %cst_12 = arith.constant dense<0xFF800000> : vector<8xf32>
    %25 = vector.multi_reduction <maximumf>, %24, %cst_12 [1] : vector<8x8xf32> to vector<8xf32>
    %26 = vector.shape_cast %25 : vector<8xf32> to vector<8x1xf32>
    %27 = vector.broadcast %26 : vector<8x1xf32> to vector<8x8xf32>
    %28 = arith.subf %24, %27 : vector<8x8xf32>
    %29 = math.exp %28 : vector<8x8xf32>
    %cst_13 = arith.constant dense<0.000000e+00> : vector<8xf32>
    %30 = vector.multi_reduction <add>, %29, %cst_13 [1] : vector<8x8xf32> to vector<8xf32>
    %31 = vector.shape_cast %30 : vector<8xf32> to vector<8x1xf32>
    %32 = tpu.reciprocal %31 {approx = true} : vector<8x1xf32> -> vector<8x1xf32>
    %33 = vector.broadcast %32 : vector<8x1xf32> to vector<8x8xf32>
    %34 = arith.mulf %29, %33 : vector<8x8xf32>
    %cst_14 = arith.constant dense<0.000000e+00> : vector<8x64xf32>
    %35 = tpu.matmul %34, %12, %cst_14 {dimension_numbers = #tpu.dot_dimension_numbers<[1], [0], [0], [1], [0, 0, 1, 1], [], []>} : vector<8x8xf32>, vector<8x64xf32>, vector<8x64xf32> -> vector<8x64xf32>
    %36 = vector.extract_strided_slice %8 {offsets = [0, 64], sizes = [8, 64], strides = [1, 1]} : vector<8x128xf32> to vector<8x64xf32>
    %37 = vector.extract_strided_slice %9 {offsets = [0, 3], sizes = [8, 1], strides = [1, 1]} : vector<8x128xf32> to vector<8x1xf32>
    %38 = vector.extract_strided_slice %11 {offsets = [1, 0], sizes = [1, 8], strides = [1, 1]} : vector<2x8xf32> to vector<1x8xf32>
    %39 = vector.broadcast %37 : vector<8x1xf32> to vector<8x8xf32>
    %40 = vector.broadcast %38 : vector<1x8xf32> to vector<8x8xf32>
    %41 = arith.addf %39, %40 : vector<8x8xf32>
    %cst_15 = arith.constant 0.000000e+00 : f32
    %42 = vector.broadcast %cst_15 : f32 to vector<8x8xf32>
    %43 = arith.cmpf ogt, %41, %42 : vector<8x8xf32>
    %cst_16 = arith.constant 2.000000e-01 : f32
    %44 = vector.broadcast %cst_16 : f32 to vector<8x8xf32>
    %45 = arith.mulf %44, %41 : vector<8x8xf32>
    %46 = arith.select %43, %41, %45 : vector<8x8xi1>, vector<8x8xf32>
    %cst_17 = arith.constant -1.000000e+30 : f32
    %47 = vector.broadcast %cst_17 : f32 to vector<8x8xf32>
    %48 = arith.select %2, %46, %47 : vector<8x8xi1>, vector<8x8xf32>
    %cst_18 = arith.constant dense<0xFF800000> : vector<8xf32>
    %49 = vector.multi_reduction <maximumf>, %48, %cst_18 [1] : vector<8x8xf32> to vector<8xf32>
    %50 = vector.shape_cast %49 : vector<8xf32> to vector<8x1xf32>
    %51 = vector.broadcast %50 : vector<8x1xf32> to vector<8x8xf32>
    %52 = arith.subf %48, %51 : vector<8x8xf32>
    %53 = math.exp %52 : vector<8x8xf32>
    %cst_19 = arith.constant dense<0.000000e+00> : vector<8xf32>
    %54 = vector.multi_reduction <add>, %53, %cst_19 [1] : vector<8x8xf32> to vector<8xf32>
    %55 = vector.shape_cast %54 : vector<8xf32> to vector<8x1xf32>
    %56 = tpu.reciprocal %55 {approx = true} : vector<8x1xf32> -> vector<8x1xf32>
    %57 = vector.broadcast %56 : vector<8x1xf32> to vector<8x8xf32>
    %58 = arith.mulf %53, %57 : vector<8x8xf32>
    %cst_20 = arith.constant dense<0.000000e+00> : vector<8x64xf32>
    %59 = tpu.matmul %58, %36, %cst_20 {dimension_numbers = #tpu.dot_dimension_numbers<[1], [0], [0], [1], [0, 0, 1, 1], [], []>} : vector<8x8xf32>, vector<8x64xf32>, vector<8x64xf32> -> vector<8x64xf32>
    %60 = tpu.concatenate %35, %59 in 1 : vector<8x64xf32>, vector<8x64xf32> -> vector<8x128xf32>
    %61 = vector.broadcast %7 : vector<1x128xf32> to vector<8x128xf32>
    %62 = arith.addf %60, %61 : vector<8x128xf32>
    %cst_21 = arith.constant 0.000000e+00 : f32
    %63 = vector.broadcast %cst_21 : f32 to vector<8x128xf32>
    %64 = arith.cmpf ogt, %62, %63 : vector<8x128xf32>
    %cst_22 = arith.constant 0.000000e+00 : f32
    %65 = vector.broadcast %cst_22 : f32 to vector<8x128xf32>
    %66 = arith.minimumf %62, %65 : vector<8x128xf32>
    %67 = math.exp %66 : vector<8x128xf32>
    %cst_23 = arith.constant 1.000000e+00 : f32
    %68 = vector.broadcast %cst_23 : f32 to vector<8x128xf32>
    %69 = arith.subf %67, %68 : vector<8x128xf32>
    %70 = arith.select %64, %62, %69 : vector<8x128xi1>, vector<8x128xf32>
    %c8 = arith.constant 8 : index
    %c0_24 = arith.constant 0 : index
    %71 = vector.load %arg2[%c8, %c0_24] : memref<400x128xf32, #tpu.memory_space<vmem>>, vector<128x128xf32>
    %72 = vector.extract_strided_slice %4 {offsets = [1, 0], sizes = [1, 128], strides = [1, 1]} : vector<8x128xf32> to vector<1x128xf32>
    %cst_25 = arith.constant dense<0.000000e+00> : vector<8x128xf32>
    %73 = tpu.matmul %70, %71, %cst_25 {dimension_numbers = #tpu.dot_dimension_numbers<[1], [0], [0], [1], [0, 0, 1, 1], [], []>} : vector<8x128xf32>, vector<128x128xf32>, vector<8x128xf32> -> vector<8x128xf32>
    %cst_26 = arith.constant dense<0.000000e+00> : vector<8x128xf32>
    %74 = tpu.matmul %73, %3, %cst_26 {dimension_numbers = #tpu.dot_dimension_numbers<[1], [0], [0], [1], [0, 0, 1, 1], [], []>} : vector<8x128xf32>, vector<128x128xf32>, vector<8x128xf32> -> vector<8x128xf32>
    %75 = vector.extract_strided_slice %74 {offsets = [0, 4], sizes = [8, 2], strides = [1, 1]} : vector<8x128xf32> to vector<8x2xf32>
    %76 = tpu.transpose %75, [1, 0] : vector<8x2xf32> -> vector<2x8xf32>
    %77 = vector.extract_strided_slice %73 {offsets = [0, 0], sizes = [8, 64], strides = [1, 1]} : vector<8x128xf32> to vector<8x64xf32>
    %78 = vector.extract_strided_slice %74 {offsets = [0, 6], sizes = [8, 1], strides = [1, 1]} : vector<8x128xf32> to vector<8x1xf32>
    %79 = vector.extract_strided_slice %76 {offsets = [0, 0], sizes = [1, 8], strides = [1, 1]} : vector<2x8xf32> to vector<1x8xf32>
    %80 = vector.broadcast %78 : vector<8x1xf32> to vector<8x8xf32>
    %81 = vector.broadcast %79 : vector<1x8xf32> to vector<8x8xf32>
    %82 = arith.addf %80, %81 : vector<8x8xf32>
    %cst_27 = arith.constant 0.000000e+00 : f32
    %83 = vector.broadcast %cst_27 : f32 to vector<8x8xf32>
    %84 = arith.cmpf ogt, %82, %83 : vector<8x8xf32>
    %cst_28 = arith.constant 2.000000e-01 : f32
    %85 = vector.broadcast %cst_28 : f32 to vector<8x8xf32>
    %86 = arith.mulf %85, %82 : vector<8x8xf32>
    %87 = arith.select %84, %82, %86 : vector<8x8xi1>, vector<8x8xf32>
    %cst_29 = arith.constant -1.000000e+30 : f32
    %88 = vector.broadcast %cst_29 : f32 to vector<8x8xf32>
    %89 = arith.select %2, %87, %88 : vector<8x8xi1>, vector<8x8xf32>
    %cst_30 = arith.constant dense<0xFF800000> : vector<8xf32>
    %90 = vector.multi_reduction <maximumf>, %89, %cst_30 [1] : vector<8x8xf32> to vector<8xf32>
    %91 = vector.shape_cast %90 : vector<8xf32> to vector<8x1xf32>
    %92 = vector.broadcast %91 : vector<8x1xf32> to vector<8x8xf32>
    %93 = arith.subf %89, %92 : vector<8x8xf32>
    %94 = math.exp %93 : vector<8x8xf32>
    %cst_31 = arith.constant dense<0.000000e+00> : vector<8xf32>
    %95 = vector.multi_reduction <add>, %94, %cst_31 [1] : vector<8x8xf32> to vector<8xf32>
    %96 = vector.shape_cast %95 : vector<8xf32> to vector<8x1xf32>
    %97 = tpu.reciprocal %96 : vector<8x1xf32> -> vector<8x1xf32>
    %98 = vector.broadcast %97 : vector<8x1xf32> to vector<8x8xf32>
    %99 = arith.mulf %94, %98 : vector<8x8xf32>
    %cst_32 = arith.constant dense<0.000000e+00> : vector<8x64xf32>
    %100 = tpu.matmul %99, %77, %cst_32 {dimension_numbers = #tpu.dot_dimension_numbers<[1], [0], [0], [1], [0, 0, 1, 1], [], []>} : vector<8x8xf32>, vector<8x64xf32>, vector<8x64xf32> -> vector<8x64xf32>
    %101 = vector.extract_strided_slice %73 {offsets = [0, 64], sizes = [8, 64], strides = [1, 1]} : vector<8x128xf32> to vector<8x64xf32>
    %102 = vector.extract_strided_slice %74 {offsets = [0, 7], sizes = [8, 1], strides = [1, 1]} : vector<8x128xf32> to vector<8x1xf32>
    %103 = vector.extract_strided_slice %76 {offsets = [1, 0], sizes = [1, 8], strides = [1, 1]} : vector<2x8xf32> to vector<1x8xf32>
    %104 = vector.broadcast %102 : vector<8x1xf32> to vector<8x8xf32>
    %105 = vector.broadcast %103 : vector<1x8xf32> to vector<8x8xf32>
    %106 = arith.addf %104, %105 : vector<8x8xf32>
    %cst_33 = arith.constant 0.000000e+00 : f32
    %107 = vector.broadcast %cst_33 : f32 to vector<8x8xf32>
    %108 = arith.cmpf ogt, %106, %107 : vector<8x8xf32>
    %cst_34 = arith.constant 2.000000e-01 : f32
    %109 = vector.broadcast %cst_34 : f32 to vector<8x8xf32>
    %110 = arith.mulf %109, %106 : vector<8x8xf32>
    %111 = arith.select %108, %106, %110 : vector<8x8xi1>, vector<8x8xf32>
    %cst_35 = arith.constant -1.000000e+30 : f32
    %112 = vector.broadcast %cst_35 : f32 to vector<8x8xf32>
    %113 = arith.select %2, %111, %112 : vector<8x8xi1>, vector<8x8xf32>
    %cst_36 = arith.constant dense<0xFF800000> : vector<8xf32>
    %114 = vector.multi_reduction <maximumf>, %113, %cst_36 [1] : vector<8x8xf32> to vector<8xf32>
    %115 = vector.shape_cast %114 : vector<8xf32> to vector<8x1xf32>
    %116 = vector.broadcast %115 : vector<8x1xf32> to vector<8x8xf32>
    %117 = arith.subf %113, %116 : vector<8x8xf32>
    %118 = math.exp %117 : vector<8x8xf32>
    %cst_37 = arith.constant dense<0.000000e+00> : vector<8xf32>
    %119 = vector.multi_reduction <add>, %118, %cst_37 [1] : vector<8x8xf32> to vector<8xf32>
    %120 = vector.shape_cast %119 : vector<8xf32> to vector<8x1xf32>
    %121 = tpu.reciprocal %120 : vector<8x1xf32> -> vector<8x1xf32>
    %122 = vector.broadcast %121 : vector<8x1xf32> to vector<8x8xf32>
    %123 = arith.mulf %118, %122 : vector<8x8xf32>
    %cst_38 = arith.constant dense<0.000000e+00> : vector<8x64xf32>
    %124 = tpu.matmul %123, %101, %cst_38 {dimension_numbers = #tpu.dot_dimension_numbers<[1], [0], [0], [1], [0, 0, 1, 1], [], []>} : vector<8x8xf32>, vector<8x64xf32>, vector<8x64xf32> -> vector<8x64xf32>
    %125 = tpu.concatenate %100, %124 in 1 : vector<8x64xf32>, vector<8x64xf32> -> vector<8x128xf32>
    %126 = vector.broadcast %72 : vector<1x128xf32> to vector<8x128xf32>
    %127 = arith.addf %125, %126 : vector<8x128xf32>
    %cst_39 = arith.constant 0.000000e+00 : f32
    %128 = vector.broadcast %cst_39 : f32 to vector<8x128xf32>
    %129 = arith.cmpf ogt, %127, %128 : vector<8x128xf32>
    %cst_40 = arith.constant 0.000000e+00 : f32
    %130 = vector.broadcast %cst_40 : f32 to vector<8x128xf32>
    %131 = arith.minimumf %127, %130 : vector<8x128xf32>
    %132 = math.exp %131 : vector<8x128xf32>
    %cst_41 = arith.constant 1.000000e+00 : f32
    %133 = vector.broadcast %cst_41 : f32 to vector<8x128xf32>
    %134 = arith.subf %132, %133 : vector<8x128xf32>
    %135 = arith.select %129, %127, %134 : vector<8x128xi1>, vector<8x128xf32>
    %cst_42 = arith.constant dense<0.000000e+00> : vector<128xf32>
    %136 = vector.multi_reduction <add>, %135, %cst_42 [0] : vector<8x128xf32> to vector<128xf32>
    %137 = vector.shape_cast %136 : vector<128xf32> to vector<1x128xf32>
    %cst_43 = arith.constant 8.000000e+00 : f32
    %138 = vector.broadcast %cst_43 : f32 to vector<1x128xf32>
    %139 = arith.divf %137, %138 : vector<1x128xf32>
    %c136 = arith.constant 136 : index
    %c0_44 = arith.constant 0 : index
    %140 = vector.load %arg2[%c136, %c0_44] : memref<400x128xf32, #tpu.memory_space<vmem>>, vector<128x128xf32>
    %cst_45 = arith.constant dense<0.000000e+00> : vector<1x128xf32>
    %141 = tpu.matmul %139, %140, %cst_45 {dimension_numbers = #tpu.dot_dimension_numbers<[1], [0], [0], [1], [0, 0, 1, 1], [], []>} : vector<1x128xf32>, vector<128x128xf32>, vector<1x128xf32> -> vector<1x128xf32>
    %142 = vector.extract_strided_slice %4 {offsets = [2, 0], sizes = [1, 128], strides = [1, 1]} : vector<8x128xf32> to vector<1x128xf32>
    %143 = arith.addf %141, %142 : vector<1x128xf32>
    %c0_46 = arith.constant 0 : index
    %c0_47 = arith.constant 0 : index
    %144 = vector.load %arg3[%c0_46, %c0_47] : memref<1x128xf32, #tpu.memory_space<vmem>>, vector<1x128xf32>
    tpu.vector_store %arg3[%c0_46, %c0_47], %143 {strides = array<i32>} : memref<1x128xf32, #tpu.memory_space<vmem>>, vector<1x128xf32>,
    return
  }
}

</mosaic_0001>

<llo_original>
// kernel: zslgnn_forward.1
$region0: #{zslgnn_forward.1}
  #allocation0 [shape = 'u32[]', space=smem, size = 0x4, offset = 0x4, fixed_abs, tag = 'smem constant byte address 0x4 - core index']
  #allocation1 [shape = 'u32[144,128]{1,0:T(1,128)}', space=vmem, size = 0x12000, scoped, tag = 'internal scratch']
  %s0 = inlined_call_operand.vmem [shape: f32[8,4], index: 0, kind: input, shape index: {}]
  %s1 = inlined_call_operand.vmem [shape: f32[8,8], index: 1, kind: input, shape index: {}]
  %s2 = inlined_call_operand.hbm [shape: f32[400,128], index: 2, kind: input, shape index: {}]
  %s3 = inlined_call_operand.hbm [shape: f32[1,128], index: 3, kind: output, shape index: {}]
  %s4 = sld [smem:[#allocation0]]
  $region26: #{zslgnn_forward.1} parent=0
    _
  %s6 = ssub.s32 1, %s4
  %s7 = scalar_select 0, %s6, %s4
  $region1: #{zslgnn_forward.1} parent=0
    #allocation2 [shape = 'u8[204800]{0}', space=vmem, size = 0x32000, scoped, tag = 'input window, operand 2, single buffered']
    #allocation3 [shape = 's32[1]{0}', space=sflag, size = 0x4, scoped, tag = 'scoped memory for zslgnn_forward.1']
    #allocation4 [shape = 's32[1]{0}', space=sflag, size = 0x4, scoped, tag = 'scoped memory for zslgnn_forward.1']
    #allocation5 [shape = 'u8[512]{0}', space=vmem, size = 0x400, scoped, tag = 'output window, operand 0, single buffered']
    %8 = vsyncpa [#allocation3], 0
    %9 = vsyncpa [#allocation4], 0
    // Predicated region
    $region2: #{zslgnn_forward.1} parent=1 // pred_check
      _
    $region3: #{zslgnn_forward.1} parent=1 // pred_check_branch
      %11 = sbr.rel (0) target = $region5
    $region4: #{zslgnn_forward.1} parent=1 // pred_region
      _
    $region5: #{zslgnn_forward.1} parent=1 // pred_fallthru
      _
    // Predicated region
    $region6: #{zslgnn_forward.1} parent=1 // pred_check
      _
    $region7: #{zslgnn_forward.1} parent=1 // pred_check_branch
      %13 = sbr.rel (0) target = $region9
    $region8: #{zslgnn_forward.1} parent=1 // pred_region
      _
    $region9: #{zslgnn_forward.1} parent=1 // pred_fallthru
      _
    // Predicated region
    $region10: #{zslgnn_forward.1} parent=1 // pred_check
      _
    $region11: #{zslgnn_forward.1} parent=1 // pred_check_branch
      %15 = sbr.rel (0) target = $region13
    $region12: #{zslgnn_forward.1} parent=1 // pred_region
      %s17 = ssub.s32 6400, 6400
      %18 = vsyncadd [#allocation3], %s17
      %s19 = sshll.u32 [#allocation2], 4
      %s20 = int_to_ptr.vmem [resolvable:$true] %s19
      %25 = dma.hbm_to_vmem [thread:$0]  %s2, 6400, %s20, [#allocation3], 128, 128, 8
    $region13: #{zslgnn_forward.1} parent=1 // pred_fallthru
      _
    // Predicated region
    $region14: #{zslgnn_forward.1} parent=1 // pred_check
      _
    $region15: #{zslgnn_forward.1} parent=1 // pred_check_branch
      %27 = sbr.rel (0) target = $region17
    $region16: #{zslgnn_forward.1} parent=1 // pred_region
      %28 = dma.done [#allocation3], 6400
    $region17: #{zslgnn_forward.1} parent=1 // pred_fallthru
      _
    %v29 = vld [vmem:[%s1] sm:$0xff]
    %vm30 = vcmp.gt.f32.partialorder %v29, 0.0
    %v31 = vld [vmem:[#allocation2 + $0x108] sm:$0xff]
    %v32 = vld [vmem:[#allocation2 + $0x110] sm:$0xff]
    %v33 = vld [vmem:[#allocation2 + $0x118] sm:$0xff]
    %v34 = vld [vmem:[#allocation2 + $0x120] sm:$0xff]
    %v35 = vld [vmem:[#allocation2 + $0x128] sm:$0xff]
    %v36 = vld [vmem:[#allocation2 + $0x130] sm:$0xff]
    %v37 = vld [vmem:[#allocation2 + $0x138] sm:$0xff]
    %v38 = vld [vmem:[#allocation2 + $0x140] sm:$0xff]
    %v39 = vld [vmem:[#allocation2 + $0x148] sm:$0xff]
    %v40 = vld [vmem:[#allocation2 + $0x150] sm:$0xff]
    %v41 = vld [vmem:[#allocation2 + $0x158] sm:$0xff]
    %v42 = vld [vmem:[#allocation2 + $0x160] sm:$0xff]
    %v43 = vld [vmem:[#allocation2 + $0x168] sm:$0xff]
    %v44 = vld [vmem:[#allocation2 + $0x170] sm:$0xff]
    %v45 = vld [vmem:[#allocation2 + $0x178] sm:$0xff]
    %v46 = vld [vmem:[#allocation2 + $0x180] sm:$0xff]
    %v47 = vld [vmem:[#allocation2 + $0x188] sm:$0xff]
    %v48 = vld [vmem:[%s0] sm:$0xff]
    %v49 = vld [vmem:[#allocation2] sm:$0xf]
    %vm50 = vcmask 31744
    %v52 = vsel %vm50, %v48, 0
    %vm54 = vcmask 1043456
    %v56 = vsel %vm54, %v49, 0
    %58 = vmatprep.subr.mxu0 0.0
    %59 = vmatpush1.msra.mxu0 %v56
    %60 = vmatprep.subr.mxu0 0.0
    %61 = vmatpush1.msra.mxu0 0.0
    %62 = vmatprep.subr.mxu0 0.0
    %63 = vmatpush1.msra.mxu0 0.0
    %64 = vmatprep.subr.mxu0 0.0
    %65 = vmatpush1.msra.mxu0 0.0
    %66 = vmatprep.subr.mxu0 0.0
    %67 = vmatpush1.msra.mxu0 0.0
    %68 = vmatprep.subr.mxu0 0.0
    %69 = vmatpush1.msra.mxu0 0.0
    %70 = vmatprep.subr.mxu0 0.0
    %71 = vmatpush1.msra.mxu0 0.0
    %72 = vmatprep.subr.mxu0 0.0
    %73 = vmatpush1.msra.mxu0 0.0
    %74 = vmatprep.subr.mxu0 0.0
    %75 = vmatpush1.msra.mxu0 0.0
    %76 = vmatprep.subr.mxu0 0.0
    %77 = vmatpush1.msra.mxu0 0.0
    %78 = vmatprep.subr.mxu0 0.0
    %79 = vmatpush1.msra.mxu0 0.0
    %80 = vmatprep.subr.mxu0 0.0
    %81 = vmatpush1.msra.mxu0 0.0
    %82 = vmatprep.subr.mxu0 0.0
    %83 = vmatpush1.msra.mxu0 0.0
    %84 = vmatprep.subr.mxu0 0.0
    %85 = vmatpush1.msra.mxu0 0.0
    %86 = vmatprep.subr.mxu0 0.0
    %87 = vmatpush1.msra.mxu0 0.0
    %88 = vmatprep.subr.mxu0 0.0
    %89 = vmatpush1.msra.mxu0 0.0
    %90 = vmatprep.subr.mxu0 0.0
    %91 = vmatpush1.msra.mxu0 0.0
    %92 = vmatprep.subr.mxu0 0.0
    %93 = vmatpush1.msra.mxu0 0.0
    %94 = vmatprep.subr.mxu0 0.0
    %95 = vmatpush1.msra.mxu0 0.0
    %96 = vmatprep.subr.mxu0 0.0
    %97 = vmatpush1.msra.mxu0 0.0
    %98 = vmatprep.subr.mxu0 0.0
    %99 = vmatpush1.msra.mxu0 0.0
    %100 = vmatprep.subr.mxu0 0.0
    %101 = vmatpush1.msra.mxu0 0.0
    %102 = vmatprep.subr.mxu0 0.0
    %103 = vmatpush1.msra.mxu0 0.0
    %104 = vmatprep.subr.mxu0 0.0
    %105 = vmatpush1.msra.mxu0 0.0
    %106 = vmatprep.subr.mxu0 0.0
    %107 = vmatpush1.msra.mxu0 0.0
    %108 = vmatprep.subr.mxu0 0.0
    %109 = vmatpush1.msra.mxu0 0.0
    %110 = vmatprep.subr.mxu0 0.0
    %111 = vmatpush1.msra.mxu0 0.0
    %112 = vmatprep.subr.mxu0 0.0
    %113 = vmatpush1.msra.mxu0 0.0
    %114 = vmatprep.subr.mxu0 0.0
    %115 = vmatpush1.msra.mxu0 0.0
    %116 = vmatprep.subr.mxu0 0.0
    %117 = vmatpush1.msra.mxu0 0.0
    %118 = vmatprep.subr.mxu0 0.0
    %119 = vmatpush1.msra.mxu0 0.0
    %120 = vmatprep.subr.mxu0 0.0
    %121 = vmatpush1.msra.mxu0 0.0
    %122 = vmatprep.mubr.f32.mxu0 0.0
    %123 = vmatmul.mubr.f32.gmra.mrb[0].mxu0 %v52
    %v124 = vpop.f32.mrb[0].mxu0
    %v125 = vadd.f32 0.0, %v124
    %v126 = vpop.f32.mrb[0].mxu0
    %127 = vdwg.mxu0
    %128 = vmatprep.subr.mxu0 0.0
    %129 = vmatpush1.msra.mxu0 %v31
    %130 = vmatprep.subr.mxu0 0.0
    %131 = vmatpush1.msra.mxu0 %v32
    %132 = vmatprep.subr.mxu0 0.0
    %133 = vmatpush1.msra.mxu0 %v33
    %134 = vmatprep.subr.mxu0 0.0
    %135 = vmatpush1.msra.mxu0 %v34
    %136 = vmatprep.subr.mxu0 0.0
    %137 = vmatpush1.msra.mxu0 %v35
    %138 = vmatprep.subr.mxu0 0.0
    %139 = vmatpush1.msra.mxu0 %v36
    %140 = vmatprep.subr.mxu0 0.0
    %141 = vmatpush1.msra.mxu0 %v37
    %142 = vmatprep.subr.mxu0 0.0
    %143 = vmatpush1.msra.mxu0 %v38
    %144 = vmatprep.subr.mxu0 0.0
    %145 = vmatpush1.msra.mxu0 %v39
    %146 = vmatprep.subr.mxu0 0.0
    %147 = vmatpush1.msra.mxu0 %v40
    %148 = vmatprep.subr.mxu0 0.0
    %149 = vmatpush1.msra.mxu0 %v41
    %150 = vmatprep.subr.mxu0 0.0
    %151 = vmatpush1.msra.mxu0 %v42
    %152 = vmatprep.subr.mxu0 0.0
    %153 = vmatpush1.msra.mxu0 %v43
    %154 = vmatprep.subr.mxu0 0.0
    %155 = vmatpush1.msra.mxu0 %v44
    %156 = vmatprep.subr.mxu0 0.0
    %157 = vmatpush1.msra.mxu0 %v45
    %158 = vmatprep.subr.mxu0 0.0
    %159 = vmatpush1.msra.mxu0 %v46
    %160 = vmatprep.subr.mxu0 0.0
    %161 = vmatpush1.msra.mxu0 0.0
    %162 = vmatprep.subr.mxu0 0.0
    %163 = vmatpush1.msra.mxu0 0.0
    %164 = vmatprep.subr.mxu0 0.0
    %165 = vmatpush1.msra.mxu0 0.0
    %166 = vmatprep.subr.mxu0 0.0
    %167 = vmatpush1.msra.mxu0 0.0
    %168 = vmatprep.subr.mxu0 0.0
    %169 = vmatpush1.msra.mxu0 0.0
    %170 = vmatprep.subr.mxu0 0.0
    %171 = vmatpush1.msra.mxu0 0.0
    %172 = vmatprep.subr.mxu0 0.0
    %173 = vmatpush1.msra.mxu0 0.0
    %174 = vmatprep.subr.mxu0 0.0
    %175 = vmatpush1.msra.mxu0 0.0
    %176 = vmatprep.subr.mxu0 0.0
    %177 = vmatpush1.msra.mxu0 0.0
    %178 = vmatprep.subr.mxu0 0.0
    %179 = vmatpush1.msra.mxu0 0.0
    %180 = vmatprep.subr.mxu0 0.0
    %181 = vmatpush1.msra.mxu0 0.0
    %182 = vmatprep.subr.mxu0 0.0
    %183 = vmatpush1.msra.mxu0 0.0
    %184 = vmatprep.subr.mxu0 0.0
    %185 = vmatpush1.msra.mxu0 0.0
    %186 = vmatprep.subr.mxu0 0.0
    %187 = vmatpush1.msra.mxu0 0.0
    %188 = vmatprep.subr.mxu0 0.0
    %189 = vmatpush1.msra.mxu0 0.0
    %190 = vmatprep.subr.mxu0 0.0
    %191 = vmatpush1.msra.mxu0 0.0
    %192 = vmatprep.mubr.f32.mxu0 0.0
    %193 = vmatmul.mubr.f32.gmra.mrb[0].mxu0 %v125
    %v194 = vpop.f32.mrb[0].mxu0
    %v195 = vadd.f32 0.0, %v194
    %v196 = vpop.f32.mrb[0].mxu0
    %197 = vdwg.mxu0
    %198 = vxpose.xlu0.b32.start [1/16] %v195, 128
    %199 = vxpose.xlu0.b32.cont [2/16] 0.0, 128
    %200 = vxpose.xlu0.b32.cont [3/16] 0.0, 128
    %201 = vxpose.xlu0.b32.cont [4/16] 0.0, 128
    %202 = vxpose.xlu0.b32.cont [5/16] 0.0, 128
    %203 = vxpose.xlu0.b32.cont [6/16] 0.0, 128
    %204 = vxpose.xlu0.b32.cont [7/16] 0.0, 128
    %205 = vxpose.xlu0.b32.cont [8/16] 0.0, 128
    %206 = vxpose.xlu0.b32.cont [9/16] 0.0, 128
    %207 = vxpose.xlu0.b32.cont [10/16] 0.0, 128
    %208 = vxpose.xlu0.b32.cont [11/16] 0.0, 128
    %209 = vxpose.xlu0.b32.cont [12/16] 0.0, 128
    %210 = vxpose.xlu0.b32.cont [13/16] 0.0, 128
    %211 = vxpose.xlu0.b32.cont [14/16] 0.0, 128
    %212 = vxpose.xlu0.b32.cont [15/16] 0.0, 128
    %213 = vxpose.xlu0.b32.end [16/16] 0.0, 128
    %v214 = vpop.trf.xlu0
    %v215 = vpop.trf.xlu0
    %v216 = vpop.trf.xlu0
    %v217 = vpop.trf.xlu0
    %v218 = vpop.trf.xlu0
    %v219 = vpop.trf.xlu0
    %v220 = vpop.trf.xlu0
    %v221 = vpop.trf.xlu0
    %v222 = vpop.trf.xlu0
    %v223 = vpop.trf.xlu0
    %v224 = vpop.trf.xlu0
    %v225 = vpop.trf.xlu0
    %v226 = vpop.trf.xlu0
    %v227 = vpop.trf.xlu0
    %v228 = vpop.trf.xlu0
    %v229 = vpop.trf.xlu0
    %231 = vset.pattern.permute.xlu0 2
    %232 = vperm.xlu0 %231, %v195
    %v233 = vpop.permute.xlu0 %232
    %v235 = vlaneseq
    %v236 = vshrl.u32 %v235, 7
    %v237 = vsub.s32 0, %v236
    %v238 = vrot.slane %v214, %v237
    %v239 = vadd.f32 %v233, %v238
    %vm240 = vcmp.gt.f32.partialorder %v239, 0.0
    %v241 = vmul.f32 %v239, 0.2
    %v242 = vsel %vm240, %v239, %v241
    %v243 = vsel %vm30, %v242, -1e+30
    %vm244 = vcmask 64512
    %v245 = vsel %vm244, %v243, -inf
    %246 = vmax.xlane.f32.xlu0 %v245
    %v247 = vpop.xlane.xlu0 %246
    %v248 = vsub.f32 %v243, %v247
    %v249 = vmul.f32 %v248, 1.442695
    %v250 = vpow.pop %v249
    %v251 = vsel %vm244, %v250, 0.0
    %252 = vadd.xlane.f32.xlu0 %v251
    %v253 = vpop.xlane.xlu0 %252
    %v254 = vrcp.pop %v253
    %v255 = vmul.f32 %v250, %v254
    %v257 = vsel %vm244, %v255, 0
    %259 = vmatprep.subr.mxu0 0.0
    %260 = vmatpush1.msra.mxu0 %v125
    %261 = vmatprep.subr.mxu0 0.0
    %262 = vmatpush1.msra.mxu0 0.0
    %263 = vmatprep.subr.mxu0 0.0
    %264 = vmatpush1.msra.mxu0 0.0
    %265 = vmatprep.subr.mxu0 0.0
    %266 = vmatpush1.msra.mxu0 0.0
    %267 = vmatprep.subr.mxu0 0.0
    %268 = vmatpush1.msra.mxu0 0.0
    %269 = vmatprep.subr.mxu0 0.0
    %270 = vmatpush1.msra.mxu0 0.0
    %271 = vmatprep.subr.mxu0 0.0
    %272 = vmatpush1.msra.mxu0 0.0
    %273 = vmatprep.subr.mxu0 0.0
    %274 = vmatpush1.msra.mxu0 0.0
    %275 = vmatprep.subr.mxu0 0.0
    %276 = vmatpush1.msra.mxu0 0.0
    %277 = vmatprep.subr.mxu0 0.0
    %278 = vmatpush1.msra.mxu0 0.0
    %279 = vmatprep.subr.mxu0 0.0
    %280 = vmatpush1.msra.mxu0 0.0
    %281 = vmatprep.subr.mxu0 0.0
    %282 = vmatpush1.msra.mxu0 0.0
    %283 = vmatprep.subr.mxu0 0.0
    %284 = vmatpush1.msra.mxu0 0.0
    %285 = vmatprep.subr.mxu0 0.0
    %286 = vmatpush1.msra.mxu0 0.0
    %287 = vmatprep.subr.mxu0 0.0
    %288 = vmatpush1.msra.mxu0 0.0
    %289 = vmatprep.subr.mxu0 0.0
    %290 = vmatpush1.msra.mxu0 0.0
    %291 = vmatprep.subr.mxu0 0.0
    %292 = vmatpush1.msra.mxu0 0.0
    %293 = vmatprep.subr.mxu0 0.0
    %294 = vmatpush1.msra.mxu0 0.0
    %295 = vmatprep.subr.mxu0 0.0
    %296 = vmatpush1.msra.mxu0 0.0
    %297 = vmatprep.subr.mxu0 0.0
    %298 = vmatpush1.msra.mxu0 0.0
    %299 = vmatprep.subr.mxu0 0.0
    %300 = vmatpush1.msra.mxu0 0.0
    %301 = vmatprep.subr.mxu0 0.0
    %302 = vmatpush1.msra.mxu0 0.0
    %303 = vmatprep.subr.mxu0 0.0
    %304 = vmatpush1.msra.mxu0 0.0
    %305 = vmatprep.subr.mxu0 0.0
    %306 = vmatpush1.msra.mxu0 0.0
    %307 = vmatprep.subr.mxu0 0.0
    %308 = vmatpush1.msra.mxu0 0.0
    %309 = vmatprep.subr.mxu0 0.0
    %310 = vmatpush1.msra.mxu0 0.0
    %311 = vmatprep.subr.mxu0 0.0
    %312 = vmatpush1.msra.mxu0 0.0
    %313 = vmatprep.subr.mxu0 0.0
    %314 = vmatpush1.msra.mxu0 0.0
    %315 = vmatprep.subr.mxu0 0.0
    %316 = vmatpush1.msra.mxu0 0.0
    %317 = vmatprep.subr.mxu0 0.0
    %318 = vmatpush1.msra.mxu0 0.0
    %319 = vmatprep.subr.mxu0 0.0
    %320 = vmatpush1.msra.mxu0 0.0
    %321 = vmatprep.subr.mxu0 0.0
    %322 = vmatpush1.msra.mxu0 0.0
    %323 = vmatprep.mubr.f32.mxu0 0.0
    %324 = vmatmul.mubr.f32.gmra.mrb[0].mxu0 %v257
    %v325 = vpop.f32.mrb[0].mxu0
    %v326 = vadd.f32 0.0, %v325
    %v327 = vpop.f32.mrb[0].mxu0
    %328 = vdwg.mxu0
    %329 = vset.pattern.permute.xlu0 3
    %330 = vperm.xlu0 %329, %v195
    %v331 = vpop.permute.xlu0 %330
    %v333 = vlaneseq
    %v334 = vshrl.u32 %v333, 7
    %v335 = vsub.s32 1, %v334
    %v336 = vrot.slane %v214, %v335
    %v337 = vadd.f32 %v331, %v336
    %vm338 = vcmp.gt.f32.partialorder %v337, 0.0
    %v339 = vmul.f32 %v337, 0.2
    %v340 = vsel %vm338, %v337, %v339
    %v341 = vsel %vm30, %v340, -1e+30
    %v342 = vsel %vm244, %v341, -inf
    %343 = vmax.xlane.f32.xlu0 %v342
    %v344 = vpop.xlane.xlu0 %343
    %v345 = vsub.f32 %v341, %v344
    %v346 = vmul.f32 %v345, 1.442695
    %v347 = vpow.pop %v346
    %v348 = vsel %vm244, %v347, 0.0
    %349 = vadd.xlane.f32.xlu0 %v348
    %v350 = vpop.xlane.xlu0 %349
    %v351 = vrcp.pop %v350
    %v352 = vmul.f32 %v347, %v351
    %354 = vrot.lane.b32.xlu0 %v125, 64
    %v355 = vpop.permute.xlu0 %354
    %v358 = vsel %vm244, %v352, 0
    %360 = vmatprep.subr.mxu0 0.0
    %361 = vmatpush1.msra.mxu0 %v355
    %362 = vmatprep.subr.mxu0 0.0
    %363 = vmatpush1.msra.mxu0 0.0
    %364 = vmatprep.subr.mxu0 0.0
    %365 = vmatpush1.msra.mxu0 0.0
    %366 = vmatprep.subr.mxu0 0.0
    %367 = vmatpush1.msra.mxu0 0.0
    %368 = vmatprep.subr.mxu0 0.0
    %369 = vmatpush1.msra.mxu0 0.0
    %370 = vmatprep.subr.mxu0 0.0
    %371 = vmatpush1.msra.mxu0 0.0
    %372 = vmatprep.subr.mxu0 0.0
    %373 = vmatpush1.msra.mxu0 0.0
    %374 = vmatprep.subr.mxu0 0.0
    %375 = vmatpush1.msra.mxu0 0.0
    %376 = vmatprep.subr.mxu0 0.0
    %377 = vmatpush1.msra.mxu0 0.0
    %378 = vmatprep.subr.mxu0 0.0
    %379 = vmatpush1.msra.mxu0 0.0
    %380 = vmatprep.subr.mxu0 0.0
    %381 = vmatpush1.msra.mxu0 0.0
    %382 = vmatprep.subr.mxu0 0.0
    %383 = vmatpush1.msra.mxu0 0.0
    %384 = vmatprep.subr.mxu0 0.0
    %385 = vmatpush1.msra.mxu0 0.0
    %386 = vmatprep.subr.mxu0 0.0
    %387 = vmatpush1.msra.mxu0 0.0
    %388 = vmatprep.subr.mxu0 0.0
    %389 = vmatpush1.msra.mxu0 0.0
    %390 = vmatprep.subr.mxu0 0.0
    %391 = vmatpush1.msra.mxu0 0.0
    %392 = vmatprep.subr.mxu0 0.0
    %393 = vmatpush1.msra.mxu0 0.0
    %394 = vmatprep.subr.mxu0 0.0
    %395 = vmatpush1.msra.mxu0 0.0
    %396 = vmatprep.subr.mxu0 0.0
    %397 = vmatpush1.msra.mxu0 0.0
    %398 = vmatprep.subr.mxu0 0.0
    %399 = vmatpush1.msra.mxu0 0.0
    %400 = vmatprep.subr.mxu0 0.0
    %401 = vmatpush1.msra.mxu0 0.0
    %402 = vmatprep.subr.mxu0 0.0
    %403 = vmatpush1.msra.mxu0 0.0
    %404 = vmatprep.subr.mxu0 0.0
    %405 = vmatpush1.msra.mxu0 0.0
    %406 = vmatprep.subr.mxu0 0.0
    %407 = vmatpush1.msra.mxu0 0.0
    %408 = vmatprep.subr.mxu0 0.0
    %409 = vmatpush1.msra.mxu0 0.0
    %410 = vmatprep.subr.mxu0 0.0
    %411 = vmatpush1.msra.mxu0 0.0
    %412 = vmatprep.subr.mxu0 0.0
    %413 = vmatpush1.msra.mxu0 0.0
    %414 = vmatprep.subr.mxu0 0.0
    %415 = vmatpush1.msra.mxu0 0.0
    %416 = vmatprep.subr.mxu0 0.0
    %417 = vmatpush1.msra.mxu0 0.0
    %418 = vmatprep.subr.mxu0 0.0
    %419 = vmatpush1.msra.mxu0 0.0
    %420 = vmatprep.subr.mxu0 0.0
    %421 = vmatpush1.msra.mxu0 0.0
    %422 = vmatprep.subr.mxu0 0.0
    %423 = vmatpush1.msra.mxu0 0.0
    %424 = vmatprep.mubr.f32.mxu0 0.0
    %425 = vmatmul.mubr.f32.gmra.mrb[0].mxu0 %v358
    %v426 = vpop.f32.mrb[0].mxu0
    %v427 = vadd.f32 0.0, %v426
    %v428 = vpop.f32.mrb[0].mxu0
    %429 = vdwg.mxu0
    %431 = vrot.lane.b32.xlu0 %v427, 64
    %v432 = vpop.permute.xlu0 %431
    %vm434 = vcmask 523264
    %v435 = vsel %vm434, %v326, %v432
    %v436 = vlaneseq
    %v437 = vshrl.u32 %v436, 7
    %v438 = vsub.s32 0, %v437
    %v439 = vrot.slane %v47, %v438
    %v440 = vadd.f32 %v435, %v439
    %vm441 = vcmp.gt.f32.partialorder %v440, 0.0
    %v442 = vmin.f32 %v440, 0.0
    %v443 = vmul.f32 %v442, 1.442695
    %v444 = vpow.pop %v443
    %v445 = vsub.f32 %v444, 1.0
    %v446 = vsel %vm441, %v440, %v445
    %v447 = vld [vmem:[#allocation2 + $0x8] sm:$0xff]
    %v448 = vld [vmem:[#allocation2 + $0x10] sm:$0xff]
    %v449 = vld [vmem:[#allocation2 + $0x18] sm:$0xff]
    %v450 = vld [vmem:[#allocation2 + $0x20] sm:$0xff]
    %v451 = vld [vmem:[#allocation2 + $0x28] sm:$0xff]
    %v452 = vld [vmem:[#allocation2 + $0x30] sm:$0xff]
    %v453 = vld [vmem:[#allocation2 + $0x38] sm:$0xff]
    %v454 = vld [vmem:[#allocation2 + $0x40] sm:$0xff]
    %v455 = vld [vmem:[#allocation2 + $0x48] sm:$0xff]
    %v456 = vld [vmem:[#allocation2 + $0x50] sm:$0xff]
    %v457 = vld [vmem:[#allocation2 + $0x58] sm:$0xff]
    %v458 = vld [vmem:[#allocation2 + $0x60] sm:$0xff]
    %v459 = vld [vmem:[#allocation2 + $0x68] sm:$0xff]
    %v460 = vld [vmem:[#allocation2 + $0x70] sm:$0xff]
    %v461 = vld [vmem:[#allocation2 + $0x78] sm:$0xff]
    %v462 = vld [vmem:[#allocation2 + $0x80] sm:$0xff]
    %463 = vmatprep.subr.mxu0 0.0
    %464 = vmatpush1.msra.mxu0 %v447
    %465 = vmatprep.subr.mxu0 0.0
    %466 = vmatpush1.msra.mxu0 %v448
    %467 = vmatprep.subr.mxu0 0.0
    %468 = vmatpush1.msra.mxu0 %v449
    %469 = vmatprep.subr.mxu0 0.0
    %470 = vmatpush1.msra.mxu0 %v450
    %471 = vmatprep.subr.mxu0 0.0
    %472 = vmatpush1.msra.mxu0 %v451
    %473 = vmatprep.subr.mxu0 0.0
    %474 = vmatpush1.msra.mxu0 %v452
    %475 = vmatprep.subr.mxu0 0.0
    %476 = vmatpush1.msra.mxu0 %v453
    %477 = vmatprep.subr.mxu0 0.0
    %478 = vmatpush1.msra.mxu0 %v454
    %479 = vmatprep.subr.mxu0 0.0
    %480 = vmatpush1.msra.mxu0 %v455
    %481 = vmatprep.subr.mxu0 0.0
    %482 = vmatpush1.msra.mxu0 %v456
    %483 = vmatprep.subr.mxu0 0.0
    %484 = vmatpush1.msra.mxu0 %v457
    %485 = vmatprep.subr.mxu0 0.0
    %486 = vmatpush1.msra.mxu0 %v458
    %487 = vmatprep.subr.mxu0 0.0
    %488 = vmatpush1.msra.mxu0 %v459
    %489 = vmatprep.subr.mxu0 0.0
    %490 = vmatpush1.msra.mxu0 %v460
    %491 = vmatprep.subr.mxu0 0.0
    %492 = vmatpush1.msra.mxu0 %v461
    %493 = vmatprep.subr.mxu0 0.0
    %494 = vmatpush1.msra.mxu0 %v462
    %495 = vmatprep.subr.mxu0 0.0
    %496 = vmatpush1.msra.mxu0 0.0
    %497 = vmatprep.subr.mxu0 0.0
    %498 = vmatpush1.msra.mxu0 0.0
    %499 = vmatprep.subr.mxu0 0.0
    %500 = vmatpush1.msra.mxu0 0.0
    %501 = vmatprep.subr.mxu0 0.0
    %502 = vmatpush1.msra.mxu0 0.0
    %503 = vmatprep.subr.mxu0 0.0
    %504 = vmatpush1.msra.mxu0 0.0
    %505 = vmatprep.subr.mxu0 0.0
    %506 = vmatpush1.msra.mxu0 0.0
    %507 = vmatprep.subr.mxu0 0.0
    %508 = vmatpush1.msra.mxu0 0.0
    %509 = vmatprep.subr.mxu0 0.0
    %510 = vmatpush1.msra.mxu0 0.0
    %511 = vmatprep.subr.mxu0 0.0
    %512 = vmatpush1.msra.mxu0 0.0
    %513 = vmatprep.subr.mxu0 0.0
    %514 = vmatpush1.msra.mxu0 0.0
    %515 = vmatprep.subr.mxu0 0.0
    %516 = vmatpush1.msra.mxu0 0.0
    %517 = vmatprep.subr.mxu0 0.0
    %518 = vmatpush1.msra.mxu0 0.0
    %519 = vmatprep.subr.mxu0 0.0
    %520 = vmatpush1.msra.mxu0 0.0
    %521 = vmatprep.subr.mxu0 0.0
    %522 = vmatpush1.msra.mxu0 0.0
    %523 = vmatprep.subr.mxu0 0.0
    %524 = vmatpush1.msra.mxu0 0.0
    %525 = vmatprep.subr.mxu0 0.0
    %526 = vmatpush1.msra.mxu0 0.0
    %527 = vmatprep.mubr.f32.mxu0 0.0
    %528 = vmatmul.mubr.f32.gmra.mrb[0].mxu0 %v446
    %v529 = vpop.f32.mrb[0].mxu0
    %v530 = vadd.f32 0.0, %v529
    %v531 = vpop.f32.mrb[0].mxu0
    %532 = vdwg.mxu0
    %533 = vmatprep.subr.mxu0 0.0
    %534 = vmatpush1.msra.mxu0 %v31
    %535 = vmatprep.subr.mxu0 0.0
    %536 = vmatpush1.msra.mxu0 %v32
    %537 = vmatprep.subr.mxu0 0.0
    %538 = vmatpush1.msra.mxu0 %v33
    %539 = vmatprep.subr.mxu0 0.0
    %540 = vmatpush1.msra.mxu0 %v34
    %541 = vmatprep.subr.mxu0 0.0
    %542 = vmatpush1.msra.mxu0 %v35
    %543 = vmatprep.subr.mxu0 0.0
    %544 = vmatpush1.msra.mxu0 %v36
    %545 = vmatprep.subr.mxu0 0.0
    %546 = vmatpush1.msra.mxu0 %v37
    %547 = vmatprep.subr.mxu0 0.0
    %548 = vmatpush1.msra.mxu0 %v38
    %549 = vmatprep.subr.mxu0 0.0
    %550 = vmatpush1.msra.mxu0 %v39
    %551 = vmatprep.subr.mxu0 0.0
    %552 = vmatpush1.msra.mxu0 %v40
    %553 = vmatprep.subr.mxu0 0.0
    %554 = vmatpush1.msra.mxu0 %v41
    %555 = vmatprep.subr.mxu0 0.0
    %556 = vmatpush1.msra.mxu0 %v42
    %557 = vmatprep.subr.mxu0 0.0
    %558 = vmatpush1.msra.mxu0 %v43
    %559 = vmatprep.subr.mxu0 0.0
    %560 = vmatpush1.msra.mxu0 %v44
    %561 = vmatprep.subr.mxu0 0.0
    %562 = vmatpush1.msra.mxu0 %v45
    %563 = vmatprep.subr.mxu0 0.0
    %564 = vmatpush1.msra.mxu0 %v46
    %565 = vmatprep.subr.mxu0 0.0
    %566 = vmatpush1.msra.mxu0 0.0
    %567 = vmatprep.subr.mxu0 0.0
    %568 = vmatpush1.msra.mxu0 0.0
    %569 = vmatprep.subr.mxu0 0.0
    %570 = vmatpush1.msra.mxu0 0.0
    %571 = vmatprep.subr.mxu0 0.0
    %572 = vmatpush1.msra.mxu0 0.0
    %573 = vmatprep.subr.mxu0 0.0
    %574 = vmatpush1.msra.mxu0 0.0
    %575 = vmatprep.subr.mxu0 0.0
    %576 = vmatpush1.msra.mxu0 0.0
    %577 = vmatprep.subr.mxu0 0.0
    %578 = vmatpush1.msra.mxu0 0.0
    %579 = vmatprep.subr.mxu0 0.0
    %580 = vmatpush1.msra.mxu0 0.0
    %581 = vmatprep.subr.mxu0 0.0
    %582 = vmatpush1.msra.mxu0 0.0
    %583 = vmatprep.subr.mxu0 0.0
    %584 = vmatpush1.msra.mxu0 0.0
    %585 = vmatprep.subr.mxu0 0.0
    %586 = vmatpush1.msra.mxu0 0.0
    %587 = vmatprep.subr.mxu0 0.0
    %588 = vmatpush1.msra.mxu0 0.0
    %589 = vmatprep.subr.mxu0 0.0
    %590 = vmatpush1.msra.mxu0 0.0
    %591 = vmatprep.subr.mxu0 0.0
    %592 = vmatpush1.msra.mxu0 0.0
    %593 = vmatprep.subr.mxu0 0.0
    %594 = vmatpush1.msra.mxu0 0.0
    %595 = vmatprep.subr.mxu0 0.0
    %596 = vmatpush1.msra.mxu0 0.0
    %597 = vmatprep.mubr.f32.mxu0 0.0
    %598 = vmatmul.mubr.f32.gmra.mrb[0].mxu0 %v530
    %v599 = vpop.f32.mrb[0].mxu0
    %v600 = vadd.f32 0.0, %v599
    %v601 = vpop.f32.mrb[0].mxu0
    %602 = vdwg.mxu0
    %604 = vrot.lane.b32.xlu0 %v600, 124
    %v605 = vpop.permute.xlu0 %604
    %607 = vxpose.xlu0.b32.start [1/16] %v605, 128
    %608 = vxpose.xlu0.b32.cont [2/16] 0.0, 128
    %609 = vxpose.xlu0.b32.cont [3/16] 0.0, 128
    %610 = vxpose.xlu0.b32.cont [4/16] 0.0, 128
    %611 = vxpose.xlu0.b32.cont [5/16] 0.0, 128
    %612 = vxpose.xlu0.b32.cont [6/16] 0.0, 128
    %613 = vxpose.xlu0.b32.cont [7/16] 0.0, 128
    %614 = vxpose.xlu0.b32.cont [8/16] 0.0, 128
    %615 = vxpose.xlu0.b32.cont [9/16] 0.0, 128
    %616 = vxpose.xlu0.b32.cont [10/16] 0.0, 128
    %617 = vxpose.xlu0.b32.cont [11/16] 0.0, 128
    %618 = vxpose.xlu0.b32.cont [12/16] 0.0, 128
    %619 = vxpose.xlu0.b32.cont [13/16] 0.0, 128
    %620 = vxpose.xlu0.b32.cont [14/16] 0.0, 128
    %621 = vxpose.xlu0.b32.cont [15/16] 0.0, 128
    %622 = vxpose.xlu0.b32.end [16/16] 0.0, 128
    %v623 = vpop.trf.xlu0
    %v624 = vpop.trf.xlu0
    %v625 = vpop.trf.xlu0
    %v626 = vpop.trf.xlu0
    %v627 = vpop.trf.xlu0
    %v628 = vpop.trf.xlu0
    %v629 = vpop.trf.xlu0
    %v630 = vpop.trf.xlu0
    %v631 = vpop.trf.xlu0
    %v632 = vpop.trf.xlu0
    %v633 = vpop.trf.xlu0
    %v634 = vpop.trf.xlu0
    %v635 = vpop.trf.xlu0
    %v636 = vpop.trf.xlu0
    %v637 = vpop.trf.xlu0
    %v638 = vpop.trf.xlu0
    %639 = vset.pattern.permute.xlu0 6
    %640 = vperm.xlu0 %639, %v600
    %v641 = vpop.permute.xlu0 %640
    %v643 = vlaneseq
    %v644 = vshrl.u32 %v643, 7
    %v645 = vsub.s32 0, %v644
    %v646 = vrot.slane %v623, %v645
    %v647 = vadd.f32 %v641, %v646
    %vm648 = vcmp.gt.f32.partialorder %v647, 0.0
    %v649 = vmul.f32 %v647, 0.2
    %v650 = vsel %vm648, %v647, %v649
    %v651 = vsel %vm30, %v650, -1e+30
    %v652 = vsel %vm244, %v651, -inf
    %653 = vmax.xlane.f32.xlu0 %v652
    %v654 = vpop.xlane.xlu0 %653
    %v655 = vsub.f32 %v651, %v654
    %v656 = vmul.f32 %v655, 1.442695
    %v657 = vpow.pop %v656
    %v658 = vsel %vm244, %v657, 0.0
    %659 = vadd.xlane.f32.xlu0 %v658
    %v660 = vpop.xlane.xlu0 %659
    %v661 = vrcp.pop %v660
    %v662 = vmul.f32 %v657, %v661
    %v664 = vsel %vm244, %v662, 0
    %666 = vmatprep.subr.mxu0 0.0
    %667 = vmatpush1.msra.mxu0 %v530
    %668 = vmatprep.subr.mxu0 0.0
    %669 = vmatpush1.msra.mxu0 0.0
    %670 = vmatprep.subr.mxu0 0.0
    %671 = vmatpush1.msra.mxu0 0.0
    %672 = vmatprep.subr.mxu0 0.0
    %673 = vmatpush1.msra.mxu0 0.0
    %674 = vmatprep.subr.mxu0 0.0
    %675 = vmatpush1.msra.mxu0 0.0
    %676 = vmatprep.subr.mxu0 0.0
    %677 = vmatpush1.msra.mxu0 0.0
    %678 = vmatprep.subr.mxu0 0.0
    %679 = vmatpush1.msra.mxu0 0.0
    %680 = vmatprep.subr.mxu0 0.0
    %681 = vmatpush1.msra.mxu0 0.0
    %682 = vmatprep.subr.mxu0 0.0
    %683 = vmatpush1.msra.mxu0 0.0
    %684 = vmatprep.subr.mxu0 0.0
    %685 = vmatpush1.msra.mxu0 0.0
    %686 = vmatprep.subr.mxu0 0.0
    %687 = vmatpush1.msra.mxu0 0.0
    %688 = vmatprep.subr.mxu0 0.0
    %689 = vmatpush1.msra.mxu0 0.0
    %690 = vmatprep.subr.mxu0 0.0
    %691 = vmatpush1.msra.mxu0 0.0
    %692 = vmatprep.subr.mxu0 0.0
    %693 = vmatpush1.msra.mxu0 0.0
    %694 = vmatprep.subr.mxu0 0.0
    %695 = vmatpush1.msra.mxu0 0.0
    %696 = vmatprep.subr.mxu0 0.0
    %697 = vmatpush1.msra.mxu0 0.0
    %698 = vmatprep.subr.mxu0 0.0
    %699 = vmatpush1.msra.mxu0 0.0
    %700 = vmatprep.subr.mxu0 0.0
    %701 = vmatpush1.msra.mxu0 0.0
    %702 = vmatprep.subr.mxu0 0.0
    %703 = vmatpush1.msra.mxu0 0.0
    %704 = vmatprep.subr.mxu0 0.0
    %705 = vmatpush1.msra.mxu0 0.0
    %706 = vmatprep.subr.mxu0 0.0
    %707 = vmatpush1.msra.mxu0 0.0
    %708 = vmatprep.subr.mxu0 0.0
    %709 = vmatpush1.msra.mxu0 0.0
    %710 = vmatprep.subr.mxu0 0.0
    %711 = vmatpush1.msra.mxu0 0.0
    %712 = vmatprep.subr.mxu0 0.0
    %713 = vmatpush1.msra.mxu0 0.0
    %714 = vmatprep.subr.mxu0 0.0
    %715 = vmatpush1.msra.mxu0 0.0
    %716 = vmatprep.subr.mxu0 0.0
    %717 = vmatpush1.msra.mxu0 0.0
    %718 = vmatprep.subr.mxu0 0.0
    %719 = vmatpush1.msra.mxu0 0.0
    %720 = vmatprep.subr.mxu0 0.0
    %721 = vmatpush1.msra.mxu0 0.0
    %722 = vmatprep.subr.mxu0 0.0
    %723 = vmatpush1.msra.mxu0 0.0
    %724 = vmatprep.subr.mxu0 0.0
    %725 = vmatpush1.msra.mxu0 0.0
    %726 = vmatprep.subr.mxu0 0.0
    %727 = vmatpush1.msra.mxu0 0.0
    %728 = vmatprep.subr.mxu0 0.0
    %729 = vmatpush1.msra.mxu0 0.0
    %730 = vmatprep.mubr.f32.mxu0 0.0
    %731 = vmatmul.mubr.f32.gmra.mrb[0].mxu0 %v664
    %v732 = vpop.f32.mrb[0].mxu0
    %v733 = vadd.f32 0.0, %v732
    %v734 = vpop.f32.mrb[0].mxu0
    %735 = vdwg.mxu0
    %736 = vset.pattern.permute.xlu0 7
    %737 = vperm.xlu0 %736, %v600
    %v738 = vpop.permute.xlu0 %737
    %v740 = vlaneseq
    %v741 = vshrl.u32 %v740, 7
    %v742 = vsub.s32 1, %v741
    %v743 = vrot.slane %v623, %v742
    %v744 = vadd.f32 %v738, %v743
    %vm745 = vcmp.gt.f32.partialorder %v744, 0.0
    %v746 = vmul.f32 %v744, 0.2
    %v747 = vsel %vm745, %v744, %v746
    %v748 = vsel %vm30, %v747, -1e+30
    %v749 = vsel %vm244, %v748, -inf
    %750 = vmax.xlane.f32.xlu0 %v749
    %v751 = vpop.xlane.xlu0 %750
    %v752 = vsub.f32 %v748, %v751
    %v753 = vmul.f32 %v752, 1.442695
    %v754 = vpow.pop %v753
    %v755 = vsel %vm244, %v754, 0.0
    %756 = vadd.xlane.f32.xlu0 %v755
    %v757 = vpop.xlane.xlu0 %756
    %v758 = vrcp.pop %v757
    %v759 = vmul.f32 %v754, %v758
    %761 = vrot.lane.b32.xlu0 %v530, 64
    %v762 = vpop.permute.xlu0 %761
    %v765 = vsel %vm244, %v759, 0
    %767 = vmatprep.subr.mxu0 0.0
    %768 = vmatpush1.msra.mxu0 %v762
    %769 = vmatprep.subr.mxu0 0.0
    %770 = vmatpush1.msra.mxu0 0.0
    %771 = vmatprep.subr.mxu0 0.0
    %772 = vmatpush1.msra.mxu0 0.0
    %773 = vmatprep.subr.mxu0 0.0
    %774 = vmatpush1.msra.mxu0 0.0
    %775 = vmatprep.subr.mxu0 0.0
    %776 = vmatpush1.msra.mxu0 0.0
    %777 = vmatprep.subr.mxu0 0.0
    %778 = vmatpush1.msra.mxu0 0.0
    %779 = vmatprep.subr.mxu0 0.0
    %780 = vmatpush1.msra.mxu0 0.0
    %781 = vmatprep.subr.mxu0 0.0
    %782 = vmatpush1.msra.mxu0 0.0
    %783 = vmatprep.subr.mxu0 0.0
    %784 = vmatpush1.msra.mxu0 0.0
    %785 = vmatprep.subr.mxu0 0.0
    %786 = vmatpush1.msra.mxu0 0.0
    %787 = vmatprep.subr.mxu0 0.0
    %788 = vmatpush1.msra.mxu0 0.0
    %789 = vmatprep.subr.mxu0 0.0
    %790 = vmatpush1.msra.mxu0 0.0
    %791 = vmatprep.subr.mxu0 0.0
    %792 = vmatpush1.msra.mxu0 0.0
    %793 = vmatprep.subr.mxu0 0.0
    %794 = vmatpush1.msra.mxu0 0.0
    %795 = vmatprep.subr.mxu0 0.0
    %796 = vmatpush1.msra.mxu0 0.0
    %797 = vmatprep.subr.mxu0 0.0
    %798 = vmatpush1.msra.mxu0 0.0
    %799 = vmatprep.subr.mxu0 0.0
    %800 = vmatpush1.msra.mxu0 0.0
    %801 = vmatprep.subr.mxu0 0.0
    %802 = vmatpush1.msra.mxu0 0.0
    %803 = vmatprep.subr.mxu0 0.0
    %804 = vmatpush1.msra.mxu0 0.0
    %805 = vmatprep.subr.mxu0 0.0
    %806 = vmatpush1.msra.mxu0 0.0
    %807 = vmatprep.subr.mxu0 0.0
    %808 = vmatpush1.msra.mxu0 0.0
    %809 = vmatprep.subr.mxu0 0.0
    %810 = vmatpush1.msra.mxu0 0.0
    %811 = vmatprep.subr.mxu0 0.0
    %812 = vmatpush1.msra.mxu0 0.0
    %813 = vmatprep.subr.mxu0 0.0
    %814 = vmatpush1.msra.mxu0 0.0
    %815 = vmatprep.subr.mxu0 0.0
    %816 = vmatpush1.msra.mxu0 0.0
    %817 = vmatprep.subr.mxu0 0.0
    %818 = vmatpush1.msra.mxu0 0.0
    %819 = vmatprep.subr.mxu0 0.0
    %820 = vmatpush1.msra.mxu0 0.0
    %821 = vmatprep.subr.mxu0 0.0
    %822 = vmatpush1.msra.mxu0 0.0
    %823 = vmatprep.subr.mxu0 0.0
    %824 = vmatpush1.msra.mxu0 0.0
    %825 = vmatprep.subr.mxu0 0.0
    %826 = vmatpush1.msra.mxu0 0.0
    %827 = vmatprep.subr.mxu0 0.0
    %828 = vmatpush1.msra.mxu0 0.0
    %829 = vmatprep.subr.mxu0 0.0
    %830 = vmatpush1.msra.mxu0 0.0
    %831 = vmatprep.mubr.f32.mxu0 0.0
    %832 = vmatmul.mubr.f32.gmra.mrb[0].mxu0 %v765
    %v833 = vpop.f32.mrb[0].mxu0
    %v834 = vadd.f32 0.0, %v833
    %v835 = vpop.f32.mrb[0].mxu0
    %836 = vdwg.mxu0
    %838 = vrot.lane.b32.xlu0 %v834, 64
    %v839 = vpop.permute.xlu0 %838
    %v841 = vsel %vm434, %v733, %v839
    %v842 = vlaneseq
    %v843 = vshrl.u32 %v842, 7
    %v844 = vsub.s32 1, %v843
    %v845 = vrot.slane %v47, %v844
    %v846 = vadd.f32 %v841, %v845
    %vm847 = vcmp.gt.f32.partialorder %v846, 0.0
    %v848 = vmin.f32 %v846, 0.0
    %v849 = vmul.f32 %v848, 1.442695
    %v850 = vpow.pop %v849
    %v851 = vsub.f32 %v850, 1.0
    %v852 = vsel %vm847, %v846, %v851
    %v853 = vrot.slane %v852, 4
    %v854 = vadd.f32 %v852, %v853
    %v855 = vrot.slane %v854, 2
    %v856 = vadd.f32 %v854, %v855
    %v857 = vrot.slane %v856, 1
    %v858 = vadd.f32 %v856, %v857
    %v859 = vrcp.pop 8.0
    %v860 = vmul.f32 %v858, %v859
    %v861 = vld [vmem:[#allocation2 + $0x88] sm:$0xff]
    %v862 = vld [vmem:[#allocation2 + $0x90] sm:$0xff]
    %v863 = vld [vmem:[#allocation2 + $0x98] sm:$0xff]
    %v864 = vld [vmem:[#allocation2 + $0xa0] sm:$0xff]
    %v865 = vld [vmem:[#allocation2 + $0xa8] sm:$0xff]
    %v866 = vld [vmem:[#allocation2 + $0xb0] sm:$0xff]
    %v867 = vld [vmem:[#allocation2 + $0xb8] sm:$0xff]
    %v868 = vld [vmem:[#allocation2 + $0xc0] sm:$0xff]
    %v869 = vld [vmem:[#allocation2 + $0xc8] sm:$0xff]
    %v870 = vld [vmem:[#allocation2 + $0xd0] sm:$0xff]
    %v871 = vld [vmem:[#allocation2 + $0xd8] sm:$0xff]
    %v872 = vld [vmem:[#allocation2 + $0xe0] sm:$0xff]
    %v873 = vld [vmem:[#allocation2 + $0xe8] sm:$0xff]
    %v874 = vld [vmem:[#allocation2 + $0xf0] sm:$0xff]
    %v875 = vld [vmem:[#allocation2 + $0xf8] sm:$0xff]
    %v876 = vld [vmem:[#allocation2 + $0x100] sm:$0xff]
    %v878 = vrot.slane %v47, 2
    %880 = vmatprep.subr.mxu0 0.0
    %881 = vmatpush1.msra.mxu0 %v861
    %882 = vmatprep.subr.mxu0 0.0
    %883 = vmatpush1.msra.mxu0 %v862
    %884 = vmatprep.subr.mxu0 0.0
    %885 = vmatpush1.msra.mxu0 %v863
    %886 = vmatprep.subr.mxu0 0.0
    %887 = vmatpush1.msra.mxu0 %v864
    %888 = vmatprep.subr.mxu0 0.0
    %889 = vmatpush1.msra.mxu0 %v865
    %890 = vmatprep.subr.mxu0 0.0
    %891 = vmatpush1.msra.mxu0 %v866
    %892 = vmatprep.subr.mxu0 0.0
    %893 = vmatpush1.msra.mxu0 %v867
    %894 = vmatprep.subr.mxu0 0.0
    %895 = vmatpush1.msra.mxu0 %v868
    %896 = vmatprep.subr.mxu0 0.0
    %897 = vmatpush1.msra.mxu0 %v869
    %898 = vmatprep.subr.mxu0 0.0
    %899 = vmatpush1.msra.mxu0 %v870
    %900 = vmatprep.subr.mxu0 0.0
    %901 = vmatpush1.msra.mxu0 %v871
    %902 = vmatprep.subr.mxu0 0.0
    %903 = vmatpush1.msra.mxu0 %v872
    %904 = vmatprep.subr.mxu0 0.0
    %905 = vmatpush1.msra.mxu0 %v873
    %906 = vmatprep.subr.mxu0 0.0
    %907 = vmatpush1.msra.mxu0 %v874
    %908 = vmatprep.subr.mxu0 0.0
    %909 = vmatpush1.msra.mxu0 %v875
    %910 = vmatprep.subr.mxu0 0.0
    %911 = vmatpush1.msra.mxu0 %v876
    %912 = vmatprep.subr.mxu0 0.0
    %913 = vmatpush1.msra.mxu0 0.0
    %914 = vmatprep.subr.mxu0 0.0
    %915 = vmatpush1.msra.mxu0 0.0
    %916 = vmatprep.subr.mxu0 0.0
    %917 = vmatpush1.msra.mxu0 0.0
    %918 = vmatprep.subr.mxu0 0.0
    %919 = vmatpush1.msra.mxu0 0.0
    %920 = vmatprep.subr.mxu0 0.0
    %921 = vmatpush1.msra.mxu0 0.0
    %922 = vmatprep.subr.mxu0 0.0
    %923 = vmatpush1.msra.mxu0 0.0
    %924 = vmatprep.subr.mxu0 0.0
    %925 = vmatpush1.msra.mxu0 0.0
    %926 = vmatprep.subr.mxu0 0.0
    %927 = vmatpush1.msra.mxu0 0.0
    %928 = vmatprep.subr.mxu0 0.0
    %929 = vmatpush1.msra.mxu0 0.0
    %930 = vmatprep.subr.mxu0 0.0
    %931 = vmatpush1.msra.mxu0 0.0
    %932 = vmatprep.subr.mxu0 0.0
    %933 = vmatpush1.msra.mxu0 0.0
    %934 = vmatprep.subr.mxu0 0.0
    %935 = vmatpush1.msra.mxu0 0.0
    %936 = vmatprep.subr.mxu0 0.0
    %937 = vmatpush1.msra.mxu0 0.0
    %938 = vmatprep.subr.mxu0 0.0
    %939 = vmatpush1.msra.mxu0 0.0
    %940 = vmatprep.subr.mxu0 0.0
    %941 = vmatpush1.msra.mxu0 0.0
    %942 = vmatprep.subr.mxu0 0.0
    %943 = vmatpush1.msra.mxu0 0.0
    %944 = vmatprep.mubr.f32.mxu0 0.0
    %945 = vmatmul.mubr.f32.gmra.mrb[0].mxu0 %v860
    %v946 = vpop.f32.mrb[0].mxu0
    %v947 = vadd.f32 %v878, %v946
    %v948 = vpop.f32.mrb[0].mxu0
    %949 = vdwg.mxu0
    %950 = vst [vmem:[#allocation5] sm:$0x1] %v947
    // Predicated region
    $region18: #{zslgnn_forward.1} parent=1 // pred_check
      _
    $region19: #{zslgnn_forward.1} parent=1 // pred_check_branch
      %952 = sbr.rel (0) target = $region21
    $region20: #{zslgnn_forward.1} parent=1 // pred_region
      %s954 = ssub.s32 16, 16
      %955 = vsyncadd [#allocation4], %s954
      %s957 = sshll.u32 [#allocation5], 4
      %s958 = int_to_ptr.vmem [resolvable:$true] %s957
      %960 = dma.vmem_to_hbm [thread:$0]  %s958, 16, %s3, [#allocation4]
    $region21: #{zslgnn_forward.1} parent=1 // pred_fallthru
      _
    // Predicated region
    $region22: #{zslgnn_forward.1} parent=1 // pred_check
      _
    $region23: #{zslgnn_forward.1} parent=1 // pred_check_branch
      %962 = sbr.rel (0) target = $region25
    $region24: #{zslgnn_forward.1} parent=1 // pred_region
      %963 = dma.done [#allocation4], 16
    $region25: #{zslgnn_forward.1} parent=1 // pred_fallthru
      _
    %964 = vsyncpa [#allocation3], 1
    %965 = vsyncpa [#allocation4], 1

</llo_original>
